<compile_context>
chip_gen: v6e
topology: v6e:2x2x1
jax: 0.10.0
libtpu: 0.0.40
codegen_flags: <defaults>
</compile_context>

<pallas_src>
import functools

import jax
import jax.numpy as jnp
from jax.experimental import pallas as pl
from jax.experimental.pallas import tpu as pltpu


_LANE = 128
# Target for the double-buffered (in + out) block footprint per grid step.
_VMEM_BLOCK_BUDGET = 12 * 1024 * 1024
_VMEM_LIMIT_BYTES = 32 * 1024 * 1024


def _cdiv(a, b):
    return (a + b - 1) // b


def _round_up(x, m):
    return _cdiv(x, m) * m


def _choose_tiles(n_batch, n_segment, n_out, nsub, itemsize):
    """Pick (tile_b, tile_sub, grid_b, grid_s) under the VMEM block budget."""
    # Minimum legal second-minor block dim for this dtype (sublane packing).
    sub_min = max(8, 32 // itemsize)            # 8 (f32) / 16 (bf16) / 32 (int8)
    per_step_budget = _VMEM_BLOCK_BUDGET // 2   # single copy of in+out per step

    # Bytes of (input + output) per batch row per 128-lane feature group.
    unit_bytes = (n_segment + n_out) * _LANE * itemsize

    # Feature-group tile: as large as the budget allows at tile_b == 1.
    budget_sub = max(1, per_step_budget // unit_bytes)
    if budget_sub >= nsub or nsub <= sub_min:
        tile_sub = nsub                          # full extent: always legal
    else:
        tile_sub = max(sub_min, (budget_sub // sub_min) * sub_min)

    # Batch tile: amortize per-step overhead for small-feature workloads.
    block_unit_bytes = (n_segment + n_out) * tile_sub * _LANE * itemsize
    tile_b = max(1, min(n_batch, per_step_budget // block_unit_bytes))

    grid_b = _cdiv(n_batch, tile_b)
    grid_s = _cdiv(nsub, tile_sub)
    # Keep >= 2 grid steps when possible (feed both v7x TensorCores / megacore).
    if grid_b * grid_s < 2 and n_batch > 1:
        tile_b = _cdiv(n_batch, 2)
        grid_b = _cdiv(n_batch, tile_b)

    return tile_b, tile_sub, grid_b, grid_s


def _temporal_pool_kernel(x_ref, o_ref):
    # x_ref: (tile_b, n_segment, tile_sub, 128)
    # o_ref: (tile_b, n_out,     tile_sub, 128)
    # Temporal max-pool, kernel=3, stride=2, padding=1:
    #   out[t] = max(x[2t-1], x[2t], x[2t+1]); t == 0 has only the -inf pad on
    #   its left, so it reduces to max(x[0], x[1]).
    n_out = o_ref.shape[1]
    for t in range(n_out):   # n_out is small and static -> fully unrolled
        m = jnp.maximum(x_ref[:, 2 * t], x_ref[:, 2 * t + 1])
        if t > 0:
            m = jnp.maximum(m, x_ref[:, 2 * t - 1])
        o_ref[:, t] = m      # (tile_b, tile_sub, 128): sublane/lane-dense store


@functools.partial(jax.jit, static_argnames=("n_segment",))
def temporal_pool(x, n_segment):
    """Pallas implementation of TemporalPool.temporal_pool.

    x: (nt, c, h, w)  ->  (nt // 2, c, h, w)
    """
    nt, c, h, w = x.shape
    assert nt % n_segment == 0, "nt must be divisible by n_segment"
    # The PyTorch view(nt // 2, ...) after pooling requires an even n_segment.
    assert n_segment % 2 == 0, "n_segment must be even"
    n_batch = nt // n_segment
    n_out = n_segment // 2
    feat = c * h * w
    itemsize = jnp.dtype(x.dtype).itemsize

    feat128 = _round_up(feat, _LANE)
    nsub = feat128 // _LANE

    # Fuse (c, h, w) into (nsub, 128).  Pure reshape (no copy) when feat is a
    # multiple of 128 — the common case — so no extra HBM passes.
    x3 = x.reshape(n_batch, n_segment, feat)
    if feat128 != feat:
        # TODO(synk): handle ragged lane edges in-kernel (masked lane tile)
        # instead of this extra HBM pad/slice pass if such shapes matter.
        x3 = jnp.pad(x3, ((0, 0), (0, 0), (0, feat128 - feat)))
    x4 = x3.reshape(n_batch, n_segment, nsub, _LANE)

    tile_b, tile_sub, grid_b, grid_s = _choose_tiles(
        n_batch, n_segment, n_out, nsub, itemsize)

    cost = pl.CostEstimate(
        flops=2 * n_batch * n_out * feat128,   # ~2 maxima per output element
        transcendentals=0,
        bytes_accessed=(n_segment + n_out) * n_batch * feat128 * itemsize,
    )

    out4 = pl.pallas_call(
        _temporal_pool_kernel,
        out_shape=jax.ShapeDtypeStruct((n_batch, n_out, nsub, _LANE), x.dtype),
        grid_spec=pltpu.PrefetchScalarGridSpec(
            num_scalar_prefetch=0,
            grid=(grid_b, grid_s),
            in_specs=[
                pl.BlockSpec((tile_b, n_segment, tile_sub, _LANE),
                             lambda b, s: (b, 0, s, 0)),
            ],
            out_specs=pl.BlockSpec((tile_b, n_out, tile_sub, _LANE),
                                   lambda b, s: (b, 0, s, 0)),
        ),
        compiler_params=pltpu.CompilerParams(
            dimension_semantics=("parallel", "parallel"),
            vmem_limit_bytes=_VMEM_LIMIT_BYTES,
        ),
        cost_estimate=cost,
    )(x4)

    if feat128 != feat:
        out3 = out4.reshape(n_batch, n_out, feat128)[..., :feat]
        return out3.reshape(n_batch * n_out, c, h, w)
    # Pure reshape back to (nt // 2, c, h, w).  `net` == identity (see TODO).
    return out4.reshape(n_batch * n_out, c, h, w)


def _temporal_pool_reference(x, n_segment):
    """Pure-JAX reference mirroring F.max_pool3d((3,1,1),(2,1,1),(1,0,0))."""
    nt, c, h, w = x.shape
    n_batch = nt // n_segment
    xv = x.reshape(n_batch, n_segment, c, h, w)
    neg_inf = jnp.asarray(-jnp.inf, dtype=x.dtype)
    pad = jnp.full((n_batch, 1, c, h, w), neg_inf, dtype=x.dtype)
    xp = jnp.concatenate([pad, xv, pad], axis=1)  # (n_batch, n_segment+2, c, h, w)
    n_out = (n_segment - 1) // 2 + 1
    outs = []
    for t in range(n_out):
        win = xp[:, 2 * t: 2 * t + 3]
        outs.append(jnp.max(win, axis=1))
    out = jnp.stack(outs, axis=1)  # (n_batch, n_out, c, h, w)
    return out.reshape(n_batch * n_out, c, h, w)


if __name__ == "__main__":
    key = jax.random.PRNGKey(0)
    n_segment = 8
    n_batch = 2
    nt, c, h, w = n_batch * n_segment, 4, 16, 16

    x = jax.random.normal(key, (nt, c, h, w), dtype=jnp.float32)

    out = temporal_pool(x, n_segment)
    out = jax.block_until_ready(out)

    ref = _temporal_pool_reference(x, n_segment)
    assert out.shape == (nt // 2, c, h, w), out.shape
    assert jnp.allclose(out, ref), "mismatch vs reference"

    print("KERNEL_OK")
</pallas_src>

<mosaic_0001>
module attributes {stable_mosaic.version = 11 : i64} {
  func.func @_temporal_pool_kernel(%arg0: i32, %arg1: i32, %arg2: memref<1x8x8x128xf32, #tpu.memory_space<vmem>>, %arg3: memref<1x4x8x128xf32, #tpu.memory_space<vmem>>) attributes {dimension_semantics = [#tpu.dimension_semantics<parallel>, #tpu.dimension_semantics<parallel>], iteration_bounds = array<i64: 2, 1>, scalar_prefetch = 0 : i64, scratch_operands = 0 : i64, tpu.core_type = #tpu.core_type<tc>, window_params = [{transform_indices = @transform_0, window_bounds = array<i64: 1, 8, 8, 128>}, {transform_indices = @transform_1, window_bounds = array<i64: 1, 4, 8, 128>}]} {
    %c0 = arith.constant 0 : index
    %c0_0 = arith.constant 0 : index
    %c0_1 = arith.constant 0 : index
    %c0_2 = arith.constant 0 : index
    %0 = vector.load %arg2[%c0, %c0_0, %c0_1, %c0_2] : memref<1x8x8x128xf32, #tpu.memory_space<vmem>>, vector<1x1x8x128xf32>
    %1 = vector.shape_cast %0 : vector<1x1x8x128xf32> to vector<1x8x128xf32>
    %c0_3 = arith.constant 0 : index
    %c1 = arith.constant 1 : index
    %c0_4 = arith.constant 0 : index
    %c0_5 = arith.constant 0 : index
    %2 = vector.load %arg2[%c0_3, %c1, %c0_4, %c0_5] : memref<1x8x8x128xf32, #tpu.memory_space<vmem>>, vector<1x1x8x128xf32>
    %3 = vector.shape_cast %2 : vector<1x1x8x128xf32> to vector<1x8x128xf32>
    %4 = arith.maximumf %1, %3 : vector<1x8x128xf32>
    %c0_6 = arith.constant 0 : index
    %c0_7 = arith.constant 0 : index
    %c0_8 = arith.constant 0 : index
    %c0_9 = arith.constant 0 : index
    %5 = vector.load %arg3[%c0_6, %c0_7, %c0_8, %c0_9] : memref<1x4x8x128xf32, #tpu.memory_space<vmem>>, vector<1x1x8x128xf32>
    %6 = vector.shape_cast %5 : vector<1x1x8x128xf32> to vector<1x8x128xf32>
    %7 = vector.shape_cast %4 : vector<1x8x128xf32> to vector<1x1x8x128xf32>
    tpu.vector_store %arg3[%c0_6, %c0_7, %c0_8, %c0_9], %7 {strides = array<i32>} : memref<1x4x8x128xf32, #tpu.memory_space<vmem>>, vector<1x1x8x128xf32>,
    %c0_10 = arith.constant 0 : index
    %c2 = arith.constant 2 : index
    %c0_11 = arith.constant 0 : index
    %c0_12 = arith.constant 0 : index
    %8 = vector.load %arg2[%c0_10, %c2, %c0_11, %c0_12] : memref<1x8x8x128xf32, #tpu.memory_space<vmem>>, vector<1x1x8x128xf32>
    %9 = vector.shape_cast %8 : vector<1x1x8x128xf32> to vector<1x8x128xf32>
    %c0_13 = arith.constant 0 : index
    %c3 = arith.constant 3 : index
    %c0_14 = arith.constant 0 : index
    %c0_15 = arith.constant 0 : index
    %10 = vector.load %arg2[%c0_13, %c3, %c0_14, %c0_15] : memref<1x8x8x128xf32, #tpu.memory_space<vmem>>, vector<1x1x8x128xf32>
    %11 = vector.shape_cast %10 : vector<1x1x8x128xf32> to vector<1x8x128xf32>
    %12 = arith.maximumf %9, %11 : vector<1x8x128xf32>
    %c0_16 = arith.constant 0 : index
    %c1_17 = arith.constant 1 : index
    %c0_18 = arith.constant 0 : index
    %c0_19 = arith.constant 0 : index
    %13 = vector.load %arg2[%c0_16, %c1_17, %c0_18, %c0_19] : memref<1x8x8x128xf32, #tpu.memory_space<vmem>>, vector<1x1x8x128xf32>
    %14 = vector.shape_cast %13 : vector<1x1x8x128xf32> to vector<1x8x128xf32>
    %15 = arith.maximumf %12, %14 : vector<1x8x128xf32>
    %c0_20 = arith.constant 0 : index
    %c1_21 = arith.constant 1 : index
    %c0_22 = arith.constant 0 : index
    %c0_23 = arith.constant 0 : index
    %16 = vector.load %arg3[%c0_20, %c1_21, %c0_22, %c0_23] : memref<1x4x8x128xf32, #tpu.memory_space<vmem>>, vector<1x1x8x128xf32>
    %17 = vector.shape_cast %16 : vector<1x1x8x128xf32> to vector<1x8x128xf32>
    %18 = vector.shape_cast %15 : vector<1x8x128xf32> to vector<1x1x8x128xf32>
    tpu.vector_store %arg3[%c0_20, %c1_21, %c0_22, %c0_23], %18 {strides = array<i32>} : memref<1x4x8x128xf32, #tpu.memory_space<vmem>>, vector<1x1x8x128xf32>,
    %c0_24 = arith.constant 0 : index
    %c4 = arith.constant 4 : index
    %c0_25 = arith.constant 0 : index
    %c0_26 = arith.constant 0 : index
    %19 = vector.load %arg2[%c0_24, %c4, %c0_25, %c0_26] : memref<1x8x8x128xf32, #tpu.memory_space<vmem>>, vector<1x1x8x128xf32>
    %20 = vector.shape_cast %19 : vector<1x1x8x128xf32> to vector<1x8x128xf32>
    %c0_27 = arith.constant 0 : index
    %c5 = arith.constant 5 : index
    %c0_28 = arith.constant 0 : index
    %c0_29 = arith.constant 0 : index
    %21 = vector.load %arg2[%c0_27, %c5, %c0_28, %c0_29] : memref<1x8x8x128xf32, #tpu.memory_space<vmem>>, vector<1x1x8x128xf32>
    %22 = vector.shape_cast %21 : vector<1x1x8x128xf32> to vector<1x8x128xf32>
    %23 = arith.maximumf %20, %22 : vector<1x8x128xf32>
    %c0_30 = arith.constant 0 : index
    %c3_31 = arith.constant 3 : index
    %c0_32 = arith.constant 0 : index
    %c0_33 = arith.constant 0 : index
    %24 = vector.load %arg2[%c0_30, %c3_31, %c0_32, %c0_33] : memref<1x8x8x128xf32, #tpu.memory_space<vmem>>, vector<1x1x8x128xf32>
    %25 = vector.shape_cast %24 : vector<1x1x8x128xf32> to vector<1x8x128xf32>
    %26 = arith.maximumf %23, %25 : vector<1x8x128xf32>
    %c0_34 = arith.constant 0 : index
    %c2_35 = arith.constant 2 : index
    %c0_36 = arith.constant 0 : index
    %c0_37 = arith.constant 0 : index
    %27 = vector.load %arg3[%c0_34, %c2_35, %c0_36, %c0_37] : memref<1x4x8x128xf32, #tpu.memory_space<vmem>>, vector<1x1x8x128xf32>
    %28 = vector.shape_cast %27 : vector<1x1x8x128xf32> to vector<1x8x128xf32>
    %29 = vector.shape_cast %26 : vector<1x8x128xf32> to vector<1x1x8x128xf32>
    tpu.vector_store %arg3[%c0_34, %c2_35, %c0_36, %c0_37], %29 {strides = array<i32>} : memref<1x4x8x128xf32, #tpu.memory_space<vmem>>, vector<1x1x8x128xf32>,
    %c0_38 = arith.constant 0 : index
    %c6 = arith.constant 6 : index
    %c0_39 = arith.constant 0 : index
    %c0_40 = arith.constant 0 : index
    %30 = vector.load %arg2[%c0_38, %c6, %c0_39, %c0_40] : memref<1x8x8x128xf32, #tpu.memory_space<vmem>>, vector<1x1x8x128xf32>
    %31 = vector.shape_cast %30 : vector<1x1x8x128xf32> to vector<1x8x128xf32>
    %c0_41 = arith.constant 0 : index
    %c7 = arith.constant 7 : index
    %c0_42 = arith.constant 0 : index
    %c0_43 = arith.constant 0 : index
    %32 = vector.load %arg2[%c0_41, %c7, %c0_42, %c0_43] : memref<1x8x8x128xf32, #tpu.memory_space<vmem>>, vector<1x1x8x128xf32>
    %33 = vector.shape_cast %32 : vector<1x1x8x128xf32> to vector<1x8x128xf32>
    %34 = arith.maximumf %31, %33 : vector<1x8x128xf32>
    %c0_44 = arith.constant 0 : index
    %c5_45 = arith.constant 5 : index
    %c0_46 = arith.constant 0 : index
    %c0_47 = arith.constant 0 : index
    %35 = vector.load %arg2[%c0_44, %c5_45, %c0_46, %c0_47] : memref<1x8x8x128xf32, #tpu.memory_space<vmem>>, vector<1x1x8x128xf32>
    %36 = vector.shape_cast %35 : vector<1x1x8x128xf32> to vector<1x8x128xf32>
    %37 = arith.maximumf %34, %36 : vector<1x8x128xf32>
    %c0_48 = arith.constant 0 : index
    %c3_49 = arith.constant 3 : index
    %c0_50 = arith.constant 0 : index
    %c0_51 = arith.constant 0 : index
    %38 = vector.load %arg3[%c0_48, %c3_49, %c0_50, %c0_51] : memref<1x4x8x128xf32, #tpu.memory_space<vmem>>, vector<1x1x8x128xf32>
    %39 = vector.shape_cast %38 : vector<1x1x8x128xf32> to vector<1x8x128xf32>
    %40 = vector.shape_cast %37 : vector<1x8x128xf32> to vector<1x1x8x128xf32>
    tpu.vector_store %arg3[%c0_48, %c3_49, %c0_50, %c0_51], %40 {strides = array<i32>} : memref<1x4x8x128xf32, #tpu.memory_space<vmem>>, vector<1x1x8x128xf32>,
    return
  }
  func.func @transform_0(%arg0: i32, %arg1: i32) -> (i32, i32, i32, i32) {
    %c0_i32 = arith.constant 0 : i32
    %c0_i32_0 = arith.constant 0 : i32
    %c0_i32_1 = arith.constant 0 : i32
    return %arg0, %c0_i32, %arg1, %c0_i32_0 : i32, i32, i32, i32
  }
  func.func @transform_1(%arg0: i32, %arg1: i32) -> (i32, i32, i32, i32) {
    %c0_i32 = arith.constant 0 : i32
    %c0_i32_0 = arith.constant 0 : i32
    %c0_i32_1 = arith.constant 0 : i32
    return %arg0, %c0_i32, %arg1, %c0_i32_0 : i32, i32, i32, i32
  }
}

</mosaic_0001>

<llo_original>
// kernel: temporal_pool.1
$region0: #{temporal_pool.1}
  #allocation0 [shape = 'u32[]', space=smem, size = 0x4, offset = 0x4, fixed_abs, tag = 'smem constant byte address 0x4 - core index']
  #allocation1 [shape = 'u32[144,128]{1,0:T(1,128)}', space=vmem, size = 0x12000, scoped, tag = 'internal scratch']
  %s0 = inlined_call_operand.vmem [shape: f32[2,8,8,128], index: 0, kind: input, shape index: {}]
  %s1 = inlined_call_operand.vmem [shape: f32[2,4,8,128], index: 1, kind: output, shape index: {}]
  %s2 = sld [smem:[#allocation0]]
  $region37: #{temporal_pool.1} parent=0
    _
  %s4 = ssub.s32 1, %s2
  %s5 = scalar_select 0, %s4, %s2
  loop: start=0, step=1, limit=4
  $region2: #{temporal_pool.1} parent=0 // loop_pre_header
    _
  $region3: #{temporal_pool.1} parent=0 // loop_header
    %s7 = sphi 0, %s11
    %p8 = scmp.ge.s32.totalorder %s7, 4
    %s14 = sphi 0, %s26
    %s15 = sphi 0, %s22
    %s16 = sphi 0, %s14
    %s17 = sphi 0, %s15
    %s18 = sphi 0, %s16
    %s19 = sphi 0, %s17
    %s31 = sphi 0, %s33
    %s34 = sphi 0, %s31
    %s35 = sphi 0, %s34
    %s51 = sphi 0, %s35
    %s59 = sphi 0, %s61
    %s62 = sphi 0, %s59
    %s63 = sphi 0, %s62
    %s79 = sphi 0, %s63
  $region4: #{temporal_pool.1} parent=0 // loop_header_branch
    %10 = sbr.rel (%p8) target = $region8
  $region5: #{temporal_pool.1} parent=0 // loop_body
    %s12 = ssub.s32 %s7, 1
    %s13 = ssub.s32 %s7, 2
    %s20 = sadd.s32 1, %s15
    %p21 = scmp.ge.s32.totalorder %s20, 1
    %s22 = scalar_select %p21, 0, %s20
    %s23 = sadd.s32 1, %s14
    %s24 = scalar_select %p21, %s23, %s14
    %p25 = scmp.ge.s32.totalorder %s24, 2
    %s26 = scalar_select %p25, 0, %s24
    %s27 = ssub.s32 %s14, %s26
    %s28 = ssub.s32 %s15, %s22
    %s29 = sor.u32 %s27, %s28
    %p30 = scmp.eq.s32.totalorder %s29, 0
    %s32 = sadd.s32 %s31, 1
    %s33 = scalar_select %p30, %s31, %s32
    %p36 = pneg %p30
    %p37 = scmp.eq.s32.totalorder %s7, 1
    %p38 = por %p36, %p37
    %p39 = scmp.ne.s32.totalorder %s31, %s34
    %p40 = scmp.eq.s32.totalorder %s7, 0
    %p41 = por %p39, %p40
    %p42 = scmp.ne.s32.totalorder %s31, %s34
    %p43 = scmp.eq.s32.totalorder %s12, 1
    %p44 = por %p42, %p43
    %p45 = scmp.ne.s32.totalorder %s34, %s35
    %p46 = scmp.eq.s32.totalorder %s12, 0
    %p47 = por %p45, %p46
    %p48 = scmp.ne.s32.totalorder %s34, %s35
    %p49 = scmp.eq.s32.totalorder %s13, 1
    %p50 = por %p48, %p49
    %p52 = scmp.ne.s32.totalorder %s35, %s51
    %p53 = scmp.eq.s32.totalorder %s13, 0
    %p54 = por %p52, %p53
    %s55 = ssub.s32 %s14, %s26
    %s56 = ssub.s32 %s15, %s22
    %s57 = sor.u32 %s55, %s56
    %p58 = scmp.eq.s32.totalorder %s57, 0
    %s60 = sadd.s32 %s59, 1
    %s61 = scalar_select %p58, %s59, %s60
    %p64 = pneg %p58
    %p65 = scmp.eq.s32.totalorder %s7, 1
    %p66 = por %p64, %p65
    %p67 = scmp.ne.s32.totalorder %s59, %s62
    %p68 = scmp.eq.s32.totalorder %s7, 0
    %p69 = por %p67, %p68
    %p70 = scmp.ne.s32.totalorder %s59, %s62
    %p71 = scmp.eq.s32.totalorder %s12, 1
    %p72 = por %p70, %p71
    %p73 = scmp.ne.s32.totalorder %s62, %s63
    %p74 = scmp.eq.s32.totalorder %s12, 0
    %p75 = por %p73, %p74
    %p76 = scmp.ne.s32.totalorder %s62, %s63
    %p77 = scmp.eq.s32.totalorder %s13, 1
    %p78 = por %p76, %p77
    %p80 = scmp.ne.s32.totalorder %s63, %s79
    %p81 = scmp.eq.s32.totalorder %s13, 0
    %p82 = por %p80, %p81
    %p83 = scmp.le.s32.totalorder 1, %s7
    %p84 = scmp.lt.s32.totalorder %s7, 3
    %p85 = pnand %p83, %p84
    %p86 = pneg %p85
    // Predicated region
    $region9: #{temporal_pool.1} parent=5 // pred_check
      _
    $region10: #{temporal_pool.1} parent=5 // pred_check_branch
      %88 = sbr.rel (%p85) target = $region12
    $region11: #{temporal_pool.1} parent=5 // pred_region
      %s89 = ssub.s32 %s7, 1
    $region12: #{temporal_pool.1} parent=5 // pred_fallthru
      _
    %p90 = scmp.lt.s32.totalorder %s7, 2
    // Predicated region
    $region13: #{temporal_pool.1} parent=5 // pred_check
      %p91 = pneg %p90
    $region14: #{temporal_pool.1} parent=5 // pred_check_branch
      %93 = sbr.rel (%p91) target = $region16
    $region15: #{temporal_pool.1} parent=5 // pred_region
      // Predicated region
      $region17: #{temporal_pool.1} parent=15 // pred_check
        %p94 = pneg %p41
      $region18: #{temporal_pool.1} parent=15 // pred_check_branch
        %96 = sbr.rel (%p94) target = $region20
      $region19: #{temporal_pool.1} parent=15 // pred_region
        %p97 = scmp.lt.s32.totalorder %s14, 1
        %s98 = scalar_select %p97, %s14, 1
        %p99 = scmp.lt.s32.totalorder %s15, 0
        %s100 = scalar_select %p99, %s15, 0
        %s101 = smul.addr %s98, 8
        %s102 = sadd.s32 %s100, %s101
        %s103 = smul.addr %s102, 8
        %s104 = scalar_lea.vmem %s0, %s103
      $region20: #{temporal_pool.1} parent=15 // pred_fallthru
        _
    $region16: #{temporal_pool.1} parent=5 // pred_fallthru
      _
    %p105 = scmp.le.s32.totalorder 1, %s7
    %p106 = scmp.lt.s32.totalorder %s7, 3
    %p107 = pnand %p105, %p106
    %p108 = pneg %p107
    // Predicated region
    $region21: #{temporal_pool.1} parent=5 // pred_check
      _
    $region22: #{temporal_pool.1} parent=5 // pred_check_branch
      %110 = sbr.rel (%p107) target = $region24
    $region23: #{temporal_pool.1} parent=5 // pred_region
      %s111 = ssub.s32 %s7, 1
      %p112 = scmp.lt.s32.totalorder %s16, 1
      %s113 = scalar_select %p112, %s16, 1
      %p114 = scmp.lt.s32.totalorder %s17, 0
      %s115 = scalar_select %p114, %s17, 0
      %s116 = smul.addr %s113, 8
      %s117 = sadd.s32 %s115, %s116
      %s118 = smul.addr %s117, 8
      %s119 = scalar_lea.vmem %s0, %s118
      %p120 = pneg %p47
      %p121 = pneg %p44
      %p122 = pneg %p75
      %p123 = pneg %p72
      %p124 = scmp.lt.s32.totalorder %s16, 1
      %s125 = scalar_select %p124, %s16, 1
      %p126 = scmp.lt.s32.totalorder %s17, 0
      %s127 = scalar_select %p126, %s17, 0
      %s128 = smul.addr %s125, 4
      %s129 = sadd.s32 %s127, %s128
      %s130 = smul.addr %s129, 8
      %s131 = scalar_lea.vmem %s1, %s130
      %p132 = scmp.lt.s32.totalorder %s16, 1
      %s133 = scalar_select %p132, %s16, 1
      %p134 = scmp.lt.s32.totalorder %s17, 0
      %s135 = scalar_select %p134, %s17, 0
      %s136 = smul.addr %s133, 8
      %s137 = sadd.s32 %s135, %s136
      %s138 = smul.addr %s137, 8
      %s139 = scalar_lea.vmem %s0, %s138
      %p140 = scmp.lt.s32.totalorder %s16, 1
      %s141 = scalar_select %p140, %s16, 1
      %p142 = scmp.lt.s32.totalorder %s17, 0
      %s143 = scalar_select %p142, %s17, 0
      %s144 = smul.addr %s141, 4
      %s145 = sadd.s32 %s143, %s144
      %s146 = smul.addr %s145, 8
      %s147 = scalar_lea.vmem %s1, %s146
      %v148 = vld [vmem:[%s139] sm:$0xff]
      %s149 = scalar_lea.vmem %s139, 8
      %v150 = vld [vmem:[%s149] sm:$0xff]
      %v151 = vmax.f32 %v148, %v150
      %152 = vst [vmem:[%s147] sm:$0xff] %v151
      %s153 = scalar_lea.vmem %s139, 16
      %v154 = vld [vmem:[%s153] sm:$0xff]
      %s155 = scalar_lea.vmem %s139, 24
      %v156 = vld [vmem:[%s155] sm:$0xff]
      %v157 = vmax.f32 %v154, %v156
      %v158 = vld [vmem:[%s149] sm:$0xff]
      %v159 = vmax.f32 %v157, %v158
      %s160 = scalar_lea.vmem %s147, 8
      %161 = vst [vmem:[%s160] sm:$0xff] %v159
      %s162 = scalar_lea.vmem %s139, 32
      %v163 = vld [vmem:[%s162] sm:$0xff]
      %s164 = scalar_lea.vmem %s139, 40
      %v165 = vld [vmem:[%s164] sm:$0xff]
      %v166 = vmax.f32 %v163, %v165
      %v167 = vld [vmem:[%s155] sm:$0xff]
      %v168 = vmax.f32 %v166, %v167
      %s169 = scalar_lea.vmem %s147, 16
      %170 = vst [vmem:[%s169] sm:$0xff] %v168
      %s171 = scalar_lea.vmem %s139, 48
      %v172 = vld [vmem:[%s171] sm:$0xff]
      %s173 = scalar_lea.vmem %s139, 56
      %v174 = vld [vmem:[%s173] sm:$0xff]
      %v175 = vmax.f32 %v172, %v174
      %v176 = vld [vmem:[%s164] sm:$0xff]
      %v177 = vmax.f32 %v175, %v176
      %s178 = scalar_lea.vmem %s147, 24
      %179 = vst [vmem:[%s178] sm:$0xff] %v177
      %p180 = scmp.lt.s32.totalorder %s16, 1
      %s181 = scalar_select %p180, %s16, 1
      %p182 = scmp.lt.s32.totalorder %s17, 0
      %s183 = scalar_select %p182, %s17, 0
      %s184 = smul.addr %s181, 4
      %s185 = sadd.s32 %s183, %s184
      %s186 = smul.addr %s185, 8
      %s187 = scalar_lea.vmem %s1, %s186
      // Predicated region
      $region25: #{temporal_pool.1} parent=23 // pred_check
        %p188 = pneg %p72
      $region26: #{temporal_pool.1} parent=23 // pred_check_branch
        %190 = sbr.rel (%p188) target = $region28
      $region27: #{temporal_pool.1} parent=23 // pred_region
        _
      $region28: #{temporal_pool.1} parent=23 // pred_fallthru
        _
    $region24: #{temporal_pool.1} parent=5 // pred_fallthru
      _
    %p191 = scmp.le.s32.totalorder 2, %s7
    // Predicated region
    $region29: #{temporal_pool.1} parent=5 // pred_check
      %p192 = pneg %p191
    $region30: #{temporal_pool.1} parent=5 // pred_check_branch
      %194 = sbr.rel (%p192) target = $region32
    $region31: #{temporal_pool.1} parent=5 // pred_region
      %s195 = ssub.s32 %s7, 2
      // Predicated region
      $region33: #{temporal_pool.1} parent=31 // pred_check
        %p196 = pneg %p78
      $region34: #{temporal_pool.1} parent=31 // pred_check_branch
        %198 = sbr.rel (%p196) target = $region36
      $region35: #{temporal_pool.1} parent=31 // pred_region
        %p199 = scmp.lt.s32.totalorder %s18, 1
        %s200 = scalar_select %p199, %s18, 1
        %p201 = scmp.lt.s32.totalorder %s19, 0
        %s202 = scalar_select %p201, %s19, 0
        %s203 = smul.addr %s200, 4
        %s204 = sadd.s32 %s202, %s203
        %s205 = smul.addr %s204, 8
        %s206 = scalar_lea.vmem %s1, %s205
      $region36: #{temporal_pool.1} parent=31 // pred_fallthru
        _
    $region32: #{temporal_pool.1} parent=5 // pred_fallthru
      _
  $region6: #{temporal_pool.1} parent=0 // loop_footer
    %s11 = sadd.s32 1, %s7
  $region7: #{temporal_pool.1} parent=0 // loop_footer_branch
    %6 = sbr.rel target = $region3
  $region8: #{temporal_pool.1} parent=0 // loop_exit
    _

</llo_original>
